<compile_context>
chip_gen: v7x
topology: tpu7x:2x2x1
jax: 0.10.0
libtpu: 0.0.40
codegen_flags: <defaults>
</compile_context>

<pallas_src>
import jax
import jax.numpy as jnp
from jax import lax
from jax.experimental import pallas as pl
from jax.experimental.pallas import tpu as pltpu

_MAX_L_TILE = 512                         # conv-output rows per grid step (multiple of 8)
_NEG = float(jnp.finfo(jnp.float32).min)  # identity element for the running max


def _round_up(n, m):
    return ((n + m - 1) // m) * m


def _make_kernel(tl, d, l, needs_mask):
    def kernel(x_ref, w_ref, b_ref, o_ref, part_ref):
        # x_ref:    [1, 1, TL+2, D] bf16  one halo'd L tile of one batch element
        # w_ref:    [3D, D]          bf16  conv taps stacked along K (resident)
        # b_ref:    [1, D]           f32   bias (resident)
        # o_ref:    [1, 1, D]              pooled output row for this batch element
        # part_ref: [8, D]           f32   vreg-aligned running max across L tiles
        li = pl.program_id(1)

        @pl.when(li == 0)
        def _init():
            part_ref[...] = jnp.full((8, d), _NEG, dtype=jnp.float32)

        xw = x_ref[0, 0]                                                   # [TL+2, D]
        # One MXU matmul for all three taps: lane-concat the shifted slices (K = 3D).
        x3 = jnp.concatenate(
            [xw[0:tl, :], xw[1:tl + 1, :], xw[2:tl + 2, :]], axis=-1)      # [TL, 3D]
        acc = jnp.dot(x3, w_ref[...], preferred_element_type=jnp.float32)  # [TL, D]

        if needs_mask:  # trace-time: only emitted when L was padded up to nL*TL
            pos = li * tl + lax.broadcasted_iota(jnp.int32, (tl, 1), 0)
            acc = jnp.where(pos < l, acc, _NEG)

        # VPU-only fold into an [8, D] partial (no per-step cross-sublane reduce).
        part = jnp.max(acc.reshape(tl // 8, 8, d), axis=0)
        part_ref[...] = jnp.maximum(part_ref[...], part)

        @pl.when(li == pl.num_programs(1) - 1)
        def _finish():
            pooled = jnp.max(part_ref[...], axis=0, keepdims=True)         # [1, D]
            # bias add + ReLU hoisted past the max over L (bias t-independent, ReLU monotone)
            o_ref[0] = jnp.maximum(pooled + b_ref[...], 0.0).astype(o_ref.dtype)

    return kernel


def conv_pooling_forward(x, conv_weight, conv_bias, *, l_tile=_MAX_L_TILE):
    """x: [B, L, D] (batch, seq, d_model);
       conv_weight: [D, D, 3] (PyTorch Conv1d layout [out_ch, in_ch, k]);
       conv_bias: [D].
       Returns [B, D] = max_t relu(conv1d(x.permute(0,2,1)))."""
    B, L, D = x.shape
    out_dtype = x.dtype

    # --- L tiling -----------------------------------------------------------------
    tl = min(_round_up(L, 8), _round_up(l_tile, 8))
    n_l = pl.cdiv(L, tl)
    l_padded = n_l * tl
    needs_mask = l_padded != L

    # --- input prep: bf16 cast + zero pad + halo'd tiles (one XLA prep step) -------
    # The kernel reads bf16 only; the permute stays folded into the [B, L, D] layout.
    x_bf16 = x.astype(jnp.bfloat16)
    x_pad = jnp.pad(x_bf16, ((0, 0), (1, 1 + (l_padded - L)), (0, 0)))  # [B, Lp+2, D]
    if n_l == 1:
        x_tiles = x_pad[:, None, :, :]                                  # [B, 1, TL+2, D]
    else:
        win = jnp.arange(n_l)[:, None] * tl + jnp.arange(tl + 2)[None, :]
        x_tiles = jnp.take(x_pad, win, axis=1)                          # [B, nL, TL+2, D]

    # Taps stacked along K so the kernel does one [TL, 3D] @ [3D, D] matmul:
    # w3[k*D + i, o] = conv_weight[o, i, k]
    w3 = jnp.transpose(conv_weight, (2, 1, 0)).reshape(3 * D, D).astype(jnp.bfloat16)
    b_row = conv_bias.reshape(1, D).astype(jnp.float32)

    # --- VMEM budget: actual block bytes, never clamped below the footprint --------
    needed = (2 * (tl + 2) * D * 2          # double-buffered x tile (bf16)
              + 3 * D * D * 2               # weights (single-buffered, bf16)
              + D * 4                       # bias
              + 2 * D * out_dtype.itemsize  # output block
              + 8 * D * 4)                  # running-max scratch
    vmem_limit = int(min(max(2 * needed, 8 << 20), 96 << 20))
    vmem_limit = max(vmem_limit, needed + (2 << 20))

    flops = int(B * l_padded * 2 * (3 * D) * D)
    bytes_accessed = int(x_tiles.size * 2 + w3.size * 2 + b_row.size * 4
                         + B * D * out_dtype.itemsize)

    kernel = _make_kernel(tl, D, L, needs_mask)

    # TODO(synk): for D >= ~1024, also tile D_out across a third "parallel" grid axis
    # (256-wide blocks) to shrink the 3*D*D weight block (v7x 64 MiB VMEM) and feed both
    # v7x TensorCores when B is small; sweep pl.Buffered(3) on the x spec if DMA is exposed.
    out = pl.pallas_call(
        kernel,
        out_shape=jax.ShapeDtypeStruct((B, 1, D), out_dtype),
        grid_spec=pltpu.PrefetchScalarGridSpec(
            num_scalar_prefetch=0,
            grid=(B, n_l),
            in_specs=[
                pl.BlockSpec((1, 1, tl + 2, D), lambda b, l: (b, l, 0, 0)),
                pl.BlockSpec((3 * D, D), lambda b, l: (0, 0),
                             pipeline_mode=pl.Buffered(1)),   # resident, never re-fetched
                pl.BlockSpec((1, D), lambda b, l: (0, 0),
                             pipeline_mode=pl.Buffered(1)),
            ],
            out_specs=pl.BlockSpec((1, 1, D), lambda b, l: (b, 0, 0)),
            scratch_shapes=[pltpu.VMEM((8, D), jnp.float32)],
        ),
        compiler_params=pltpu.CompilerParams(
            # Batch is independent ("parallel"); only v7x's 2 TCs benefit, v5e/v6e run the
            # grid as a serial loop.  The L axis carries the running-max scratch and the
            # resident output block -> "arbitrary".
            dimension_semantics=("parallel", "arbitrary"),
            vmem_limit_bytes=vmem_limit,
        ),
        cost_estimate=pl.CostEstimate(
            flops=flops, transcendentals=0, bytes_accessed=bytes_accessed),
    )(x_tiles, w3, b_row)
    return out[:, 0, :]


def _reference(x, w, b):
    """Pure-JAX f32 reference of the PyTorch forward (conv -> relu -> global max pool)."""
    B, L, D = x.shape
    xp = jnp.pad(x, ((0, 0), (1, 1), (0, 0)))
    conv = b[None, None, :] + sum(
        jnp.einsum("bti,oi->bto", xp[:, k:k + L, :], w[:, :, k]) for k in range(3))
    return jnp.max(jax.nn.relu(conv), axis=1)


if __name__ == "__main__":
    # Shapes implied by the forward: x [batch, seq_len, d_model].
    B, L, D = 2, 16, 32

    key = jax.random.PRNGKey(0)
    kx, kw, kb = jax.random.split(key, 3)
    x = jax.random.normal(kx, (B, L, D), dtype=jnp.float32)

    # PyTorch Conv1d default init: uniform(+-1/sqrt(fan_in)), fan_in = in_ch * kernel.
    lim = 1.0 / jnp.sqrt(jnp.float32(D * 3))
    w = jax.random.uniform(kw, (D, D, 3), minval=-lim, maxval=lim, dtype=jnp.float32)
    b = jax.random.uniform(kb, (D,), minval=-lim, maxval=lim, dtype=jnp.float32)

    y = conv_pooling_forward(x, w, b)
    y = jax.block_until_ready(y)
    ref = _reference(x, w, b)
    assert y.shape == (B, D)
    # bf16 MXU inputs with f32 accumulation vs. pure-f32 reference -> loose tolerance.
    assert jnp.allclose(y, ref, atol=3e-2, rtol=3e-2), float(jnp.max(jnp.abs(y - ref)))

    # Second config exercising the multi-tile L path (ragged L -> mask + running max).
    L2 = 13
    x2 = jax.random.normal(kx, (B, L2, D), dtype=jnp.float32)
    y2 = conv_pooling_forward(x2, w, b, l_tile=8)
    y2 = jax.block_until_ready(y2)
    ref2 = _reference(x2, w, b)
    assert y2.shape == (B, D)
    assert jnp.allclose(y2, ref2, atol=3e-2, rtol=3e-2), float(jnp.max(jnp.abs(y2 - ref2)))

    print("KERNEL_OK")
</pallas_src>

<mosaic_0001>
module attributes {stable_mosaic.version = 11 : i64} {
  func.func @kernel(%arg0: i32, %arg1: i32, %arg2: memref<1x1x18x32xbf16, #tpu.memory_space<vmem>>, %arg3: memref<96x32xbf16, #tpu.memory_space<vmem>>, %arg4: memref<1x32xf32, #tpu.memory_space<vmem>>, %arg5: memref<1x1x32xf32, #tpu.memory_space<vmem>>, %arg6: memref<8x32xf32, #tpu.memory_space<vmem>>) attributes {dimension_semantics = [#tpu.dimension_semantics<parallel>, #tpu.dimension_semantics<arbitrary>], iteration_bounds = array<i64: 2, 1>, scalar_prefetch = 0 : i64, scratch_operands = 1 : i64, tpu.core_type = #tpu.core_type<tc>, window_params = [{transform_indices = @transform_0, window_bounds = array<i64: 1, 1, 18, 32>}, {pipeline_mode = #tpu.pipeline_mode<synchronous>, transform_indices = @transform_1, window_bounds = array<i64: 96, 32>}, {pipeline_mode = #tpu.pipeline_mode<synchronous>, transform_indices = @transform_2, window_bounds = array<i64: 1, 32>}, {transform_indices = @transform_3, window_bounds = array<i64: 1, 1, 32>}]} {
    %c0_i32 = arith.constant 0 : i32
    %0 = arith.cmpi eq, %arg1, %c0_i32 : i32
    %1 = arith.extui %0 : i1 to i32
    %c0_i32_0 = arith.constant 0 : i32
    %2 = arith.cmpi ne, %1, %c0_i32_0 : i32
    scf.if %2 {
      %cst_13 = arith.constant -3.40282347E+38 : f32
      %19 = vector.broadcast %cst_13 : f32 to vector<8x32xf32>
      %c0_14 = arith.constant 0 : index
      %c0_15 = arith.constant 0 : index
      %20 = vector.load %arg6[%c0_14, %c0_15] : memref<8x32xf32, #tpu.memory_space<vmem>>, vector<8x32xf32>
      tpu.vector_store %arg6[%c0_14, %c0_15], %19 {strides = array<i32>} : memref<8x32xf32, #tpu.memory_space<vmem>>, vector<8x32xf32>,
    } else {
    }
    %c0 = arith.constant 0 : index
    %c0_1 = arith.constant 0 : index
    %c0_2 = arith.constant 0 : index
    %c0_3 = arith.constant 0 : index
    %3 = vector.load %arg2[%c0, %c0_1, %c0_2, %c0_3] : memref<1x1x18x32xbf16, #tpu.memory_space<vmem>>, vector<1x1x18x32xbf16>
    %4 = vector.shape_cast %3 : vector<1x1x18x32xbf16> to vector<18x32xbf16>
    %5 = vector.extract_strided_slice %4 {offsets = [0, 0], sizes = [16, 32], strides = [1, 1]} : vector<18x32xbf16> to vector<16x32xbf16>
    %6 = vector.extract_strided_slice %4 {offsets = [1, 0], sizes = [16, 32], strides = [1, 1]} : vector<18x32xbf16> to vector<16x32xbf16>
    %7 = vector.extract_strided_slice %4 {offsets = [2, 0], sizes = [16, 32], strides = [1, 1]} : vector<18x32xbf16> to vector<16x32xbf16>
    %8 = tpu.concatenate %5, %6, %7 in 1 : vector<16x32xbf16>, vector<16x32xbf16>, vector<16x32xbf16> -> vector<16x96xbf16>
    %c0_4 = arith.constant 0 : index
    %c0_5 = arith.constant 0 : index
    %9 = vector.load %arg3[%c0_4, %c0_5] : memref<96x32xbf16, #tpu.memory_space<vmem>>, vector<96x32xbf16>
    %cst = arith.constant dense<0.000000e+00> : vector<16x32xf32>
    %10 = tpu.matmul %8, %9, %cst {dimension_numbers = #tpu.dot_dimension_numbers<[1], [0], [0], [1], [0, 0, 1, 1], [], []>} : vector<16x96xbf16>, vector<96x32xbf16>, vector<16x32xf32> -> vector<16x32xf32>
    %11 = vector.shape_cast %10 : vector<16x32xf32> to vector<2x8x32xf32>
    %cst_6 = arith.constant dense<0xFF800000> : vector<8x32xf32>
    %12 = vector.multi_reduction <maximumf>, %11, %cst_6 [0] : vector<2x8x32xf32> to vector<8x32xf32>
    %c0_7 = arith.constant 0 : index
    %c0_8 = arith.constant 0 : index
    %13 = vector.load %arg6[%c0_7, %c0_8] : memref<8x32xf32, #tpu.memory_space<vmem>>, vector<8x32xf32>
    %14 = arith.maximumf %13, %12 : vector<8x32xf32>
    %c0_9 = arith.constant 0 : index
    %c0_10 = arith.constant 0 : index
    %15 = vector.load %arg6[%c0_9, %c0_10] : memref<8x32xf32, #tpu.memory_space<vmem>>, vector<8x32xf32>
    tpu.vector_store %arg6[%c0_9, %c0_10], %14 {strides = array<i32>} : memref<8x32xf32, #tpu.memory_space<vmem>>, vector<8x32xf32>,
    %c0_i32_11 = arith.constant 0 : i32
    %16 = arith.cmpi eq, %arg1, %c0_i32_11 : i32
    %17 = arith.extui %16 : i1 to i32
    %c0_i32_12 = arith.constant 0 : i32
    %18 = arith.cmpi ne, %17, %c0_i32_12 : i32
    scf.if %18 {
      %c0_13 = arith.constant 0 : index
      %c0_14 = arith.constant 0 : index
      %19 = vector.load %arg6[%c0_13, %c0_14] : memref<8x32xf32, #tpu.memory_space<vmem>>, vector<8x32xf32>
      %cst_15 = arith.constant dense<0xFF800000> : vector<32xf32>
      %20 = vector.multi_reduction <maximumf>, %19, %cst_15 [0] : vector<8x32xf32> to vector<32xf32>
      %21 = vector.shape_cast %20 : vector<32xf32> to vector<1x32xf32>
      %c0_16 = arith.constant 0 : index
      %c0_17 = arith.constant 0 : index
      %22 = vector.load %arg4[%c0_16, %c0_17] : memref<1x32xf32, #tpu.memory_space<vmem>>, vector<1x32xf32>
      %23 = arith.addf %21, %22 : vector<1x32xf32>
      %cst_18 = arith.constant 0.000000e+00 : f32
      %24 = vector.broadcast %cst_18 : f32 to vector<1x32xf32>
      %25 = arith.maximumf %23, %24 : vector<1x32xf32>
      %c0_19 = arith.constant 0 : index
      %c0_20 = arith.constant 0 : index
      %c0_21 = arith.constant 0 : index
      %26 = vector.load %arg5[%c0_19, %c0_20, %c0_21] : memref<1x1x32xf32, #tpu.memory_space<vmem>>, vector<1x1x32xf32>
      %27 = vector.shape_cast %26 : vector<1x1x32xf32> to vector<1x32xf32>
      %28 = vector.shape_cast %25 : vector<1x32xf32> to vector<1x1x32xf32>
      tpu.vector_store %arg5[%c0_19, %c0_20, %c0_21], %28 {strides = array<i32>} : memref<1x1x32xf32, #tpu.memory_space<vmem>>, vector<1x1x32xf32>,
    } else {
    }
    return
  }
  func.func @transform_0(%arg0: i32, %arg1: i32) -> (i32, i32, i32, i32) {
    %c0_i32 = arith.constant 0 : i32
    %c0_i32_0 = arith.constant 0 : i32
    %c0_i32_1 = arith.constant 0 : i32
    return %arg0, %arg1, %c0_i32, %c0_i32_0 : i32, i32, i32, i32
  }
  func.func @transform_1(%arg0: i32, %arg1: i32) -> (i32, i32) {
    %c0_i32 = arith.constant 0 : i32
    %c0_i32_0 = arith.constant 0 : i32
    %c0_i32_1 = arith.constant 0 : i32
    return %c0_i32, %c0_i32_0 : i32, i32
  }
  func.func @transform_2(%arg0: i32, %arg1: i32) -> (i32, i32) {
    %c0_i32 = arith.constant 0 : i32
    %c0_i32_0 = arith.constant 0 : i32
    %c0_i32_1 = arith.constant 0 : i32
    return %c0_i32, %c0_i32_0 : i32, i32
  }
  func.func @transform_3(%arg0: i32, %arg1: i32) -> (i32, i32, i32) {
    %c0_i32 = arith.constant 0 : i32
    %c0_i32_0 = arith.constant 0 : i32
    %c0_i32_1 = arith.constant 0 : i32
    return %arg0, %c0_i32, %c0_i32_0 : i32, i32, i32
  }
}

</mosaic_0001>

<llo_original>
// kernel: tpu_custom_call.1
$region0: #{tpu_custom_call.1}
  #allocation0 [shape = 'u32[]', space=smem, size = 0x4, offset = 0x4, fixed_abs, tag = 'smem constant byte address 0x4 - core index']
  #allocation1 [shape = 'u32[144,128]{1,0:T(1,128)}', space=vmem, size = 0x12000, scoped, tag = 'internal scratch']
  #allocation2 [shape = 'f32[8,32]{1,0:T(8,128)}', space=vmem, size = 0x1000, scoped, tag = 'scratch operand']
  %s0 = inlined_call_operand.vmem [shape: bf16[2,1,18,32], index: 0, kind: input, shape index: {}]
  %s1 = inlined_call_operand.vmem [shape: bf16[96,32], index: 1, kind: input, shape index: {}]
  %s2 = inlined_call_operand.vmem [shape: f32[1,32], index: 2, kind: input, shape index: {}]
  %s3 = inlined_call_operand.hbm [shape: f32[2,1,32], index: 3, kind: output, shape index: {}]
  %s4 = sld [smem:[#allocation0]]
  $region53: #{tpu_custom_call.1} parent=0
    _
  %s6 = ssub.s32 1, %s4
  %s7 = scalar_select 0, %s6, %s4
  $region1: #{tpu_custom_call.1} parent=0
    #allocation3 [shape = 'u8[1024]{0}', space=vmem, size = 0x400, scoped, tag = 'output window, operand 0']
    #allocation4 [shape = 's32[2]{0}', space=sflag, size = 0x8, scoped, tag = 'scoped memory for tpu_custom_call.1']
    %8 = vsyncpa [#allocation4], 0
    %s9 = scalar_lea.sflag [#allocation4], 1
    %10 = vsyncpa %s9, 0
    loop: start=0, step=1, limit=4
    $region2: #{tpu_custom_call.1} parent=1 // loop_pre_header
      _
    $region3: #{tpu_custom_call.1} parent=1 // loop_header
      %s12 = sphi 0, %s16
      %p13 = scmp.ge.s32.totalorder %s12, 4
      %s19 = sphi 0, %s31
      %s20 = sphi 0, %s27
      %s21 = sphi 0, %s19
      %s22 = sphi 0, %s20
      %s23 = sphi 0, %s21
      %s24 = sphi 0, %s22
      %s36 = sphi 0, %s38
      %s39 = sphi 0, %s36
      %s40 = sphi 0, %s39
      %s56 = sphi 0, %s40
      %s60 = sphi 0, %s60
      %s62 = sphi 0, %s60
      %s63 = sphi 0, %s62
      %s77 = sphi 0, %s63
      %s81 = sphi 0, %s81
      %s83 = sphi 0, %s81
      %s84 = sphi 0, %s83
      %s98 = sphi 0, %s84
      %s104 = sphi 0, %s106
      %s107 = sphi 0, %s104
      %s108 = sphi 0, %s107
      %s124 = sphi 0, %s108
    $region4: #{tpu_custom_call.1} parent=1 // loop_header_branch
      %15 = sbr.rel (%p13) target = $region8
    $region5: #{tpu_custom_call.1} parent=1 // loop_body
      %s17 = ssub.s32 %s12, 1
      %s18 = ssub.s32 %s12, 2
      %s25 = sadd.s32 1, %s20
      %p26 = scmp.ge.s32.totalorder %s25, 1
      %s27 = scalar_select %p26, 0, %s25
      %s28 = sadd.s32 1, %s19
      %s29 = scalar_select %p26, %s28, %s19
      %p30 = scmp.ge.s32.totalorder %s29, 2
      %s31 = scalar_select %p30, 0, %s29
      %s32 = ssub.s32 %s19, %s31
      %s33 = ssub.s32 %s20, %s27
      %s34 = sor.u32 %s32, %s33
      %p35 = scmp.eq.s32.totalorder %s34, 0
      %s37 = sadd.s32 %s36, 1
      %s38 = scalar_select %p35, %s36, %s37
      %p41 = pneg %p35
      %p42 = scmp.eq.s32.totalorder %s12, 1
      %p43 = por %p41, %p42
      %p44 = scmp.ne.s32.totalorder %s36, %s39
      %p45 = scmp.eq.s32.totalorder %s12, 0
      %p46 = por %p44, %p45
      %p47 = scmp.ne.s32.totalorder %s36, %s39
      %p48 = scmp.eq.s32.totalorder %s17, 1
      %p49 = por %p47, %p48
      %p50 = scmp.ne.s32.totalorder %s39, %s40
      %p51 = scmp.eq.s32.totalorder %s17, 0
      %p52 = por %p50, %p51
      %p53 = scmp.ne.s32.totalorder %s39, %s40
      %p54 = scmp.eq.s32.totalorder %s18, 1
      %p55 = por %p53, %p54
      %p57 = scmp.ne.s32.totalorder %s40, %s56
      %p58 = scmp.eq.s32.totalorder %s18, 0
      %p59 = por %p57, %p58
      %s61 = sadd.s32 %s60, 1
      %p64 = scmp.eq.s32.totalorder %s12, 1
      %p65 = scmp.ne.s32.totalorder %s60, %s62
      %p66 = scmp.eq.s32.totalorder %s12, 0
      %p67 = por %p65, %p66
      %p68 = scmp.ne.s32.totalorder %s60, %s62
      %p69 = scmp.eq.s32.totalorder %s17, 1
      %p70 = por %p68, %p69
      %p71 = scmp.ne.s32.totalorder %s62, %s63
      %p72 = scmp.eq.s32.totalorder %s17, 0
      %p73 = por %p71, %p72
      %p74 = scmp.ne.s32.totalorder %s62, %s63
      %p75 = scmp.eq.s32.totalorder %s18, 1
      %p76 = por %p74, %p75
      %p78 = scmp.ne.s32.totalorder %s63, %s77
      %p79 = scmp.eq.s32.totalorder %s18, 0
      %p80 = por %p78, %p79
      %s82 = sadd.s32 %s81, 1
      %p85 = scmp.eq.s32.totalorder %s12, 1
      %p86 = scmp.ne.s32.totalorder %s81, %s83
      %p87 = scmp.eq.s32.totalorder %s12, 0
      %p88 = por %p86, %p87
      %p89 = scmp.ne.s32.totalorder %s81, %s83
      %p90 = scmp.eq.s32.totalorder %s17, 1
      %p91 = por %p89, %p90
      %p92 = scmp.ne.s32.totalorder %s83, %s84
      %p93 = scmp.eq.s32.totalorder %s17, 0
      %p94 = por %p92, %p93
      %p95 = scmp.ne.s32.totalorder %s83, %s84
      %p96 = scmp.eq.s32.totalorder %s18, 1
      %p97 = por %p95, %p96
      %p99 = scmp.ne.s32.totalorder %s84, %s98
      %p100 = scmp.eq.s32.totalorder %s18, 0
      %p101 = por %p99, %p100
      %s102 = ssub.s32 %s19, %s31
      %p103 = scmp.eq.s32.totalorder %s102, 0
      %s105 = sadd.s32 %s104, 1
      %s106 = scalar_select %p103, %s104, %s105
      %p109 = pneg %p103
      %p110 = scmp.eq.s32.totalorder %s12, 1
      %p111 = por %p109, %p110
      %p112 = scmp.ne.s32.totalorder %s104, %s107
      %p113 = scmp.eq.s32.totalorder %s12, 0
      %p114 = por %p112, %p113
      %p115 = scmp.ne.s32.totalorder %s104, %s107
      %p116 = scmp.eq.s32.totalorder %s17, 1
      %p117 = por %p115, %p116
      %p118 = scmp.ne.s32.totalorder %s107, %s108
      %p119 = scmp.eq.s32.totalorder %s17, 0
      %p120 = por %p118, %p119
      %p121 = scmp.ne.s32.totalorder %s107, %s108
      %p122 = scmp.eq.s32.totalorder %s18, 1
      %p123 = por %p121, %p122
      %p125 = scmp.ne.s32.totalorder %s108, %s124
      %p126 = scmp.eq.s32.totalorder %s18, 0
      %p127 = por %p125, %p126
      %p128 = scmp.le.s32.totalorder 1, %s12
      %p129 = scmp.lt.s32.totalorder %s12, 3
      %p130 = pnand %p128, %p129
      %p131 = pneg %p130
      // Predicated region
      $region9: #{tpu_custom_call.1} parent=5 // pred_check
        _
      $region10: #{tpu_custom_call.1} parent=5 // pred_check_branch
        %133 = sbr.rel (%p130) target = $region12
      $region11: #{tpu_custom_call.1} parent=5 // pred_region
        %s134 = ssub.s32 %s12, 1
        // Predicated region
        $region13: #{tpu_custom_call.1} parent=11 // pred_check
          %p135 = pneg %p73
        $region14: #{tpu_custom_call.1} parent=11 // pred_check_branch
          %137 = sbr.rel (%p135) target = $region16
        $region15: #{tpu_custom_call.1} parent=11 // pred_region
          _
        $region16: #{tpu_custom_call.1} parent=11 // pred_fallthru
          _
        // Predicated region
        $region17: #{tpu_custom_call.1} parent=11 // pred_check
          %p138 = pneg %p94
        $region18: #{tpu_custom_call.1} parent=11 // pred_check_branch
          %140 = sbr.rel (%p138) target = $region20
        $region19: #{tpu_custom_call.1} parent=11 // pred_region
          _
        $region20: #{tpu_custom_call.1} parent=11 // pred_fallthru
          _
      $region12: #{tpu_custom_call.1} parent=5 // pred_fallthru
        _
      %p141 = scmp.lt.s32.totalorder %s12, 2
      // Predicated region
      $region21: #{tpu_custom_call.1} parent=5 // pred_check
        %p142 = pneg %p141
      $region22: #{tpu_custom_call.1} parent=5 // pred_check_branch
        %144 = sbr.rel (%p142) target = $region24
      $region23: #{tpu_custom_call.1} parent=5 // pred_region
        // Predicated region
        $region25: #{tpu_custom_call.1} parent=23 // pred_check
          %p145 = pneg %p46
        $region26: #{tpu_custom_call.1} parent=23 // pred_check_branch
          %147 = sbr.rel (%p145) target = $region28
        $region27: #{tpu_custom_call.1} parent=23 // pred_region
          %p148 = scmp.lt.s32.totalorder %s19, 1
          %s149 = scalar_select %p148, %s19, 1
          %p150 = scmp.lt.s32.totalorder %s20, 0
          %s151 = scalar_select %p150, %s20, 0
          %s152 = smul.addr %s151, 3
          %s153 = smul.addr %s149, 3
          %s154 = sadd.s32 %s152, %s153
          %s155 = smul.addr %s154, 4
          %s156 = scalar_lea.vmem %s0, %s155
        $region28: #{tpu_custom_call.1} parent=23 // pred_fallthru
          _
      $region24: #{tpu_custom_call.1} parent=5 // pred_fallthru
        _
      %p157 = scmp.le.s32.totalorder 1, %s12
      %p158 = scmp.lt.s32.totalorder %s12, 3
      %p159 = pnand %p157, %p158
      %p160 = pneg %p159
      // Predicated region
      $region29: #{tpu_custom_call.1} parent=5 // pred_check
        _
      $region30: #{tpu_custom_call.1} parent=5 // pred_check_branch
        %162 = sbr.rel (%p159) target = $region32
      $region31: #{tpu_custom_call.1} parent=5 // pred_region
        %s163 = ssub.s32 %s12, 1
        %p164 = scmp.lt.s32.totalorder %s21, 1
        %s165 = scalar_select %p164, %s21, 1
        %p166 = scmp.lt.s32.totalorder %s22, 0
        %s167 = scalar_select %p166, %s22, 0
        %s168 = smul.addr %s167, 3
        %s169 = smul.addr %s165, 3
        %s170 = sadd.s32 %s168, %s169
        %s171 = smul.addr %s170, 4
        %s172 = scalar_lea.vmem %s0, %s171
        %p173 = pneg %p52
        %p174 = pneg %p49
        %p175 = pneg %p73
        %p176 = pneg %p70
        %p177 = pneg %p94
        %p178 = pneg %p91
        %p179 = pneg %p120
        %p180 = pneg %p117
        %s181 = sand.u32 %s107, 1
        %s182 = scalar_lea.sflag [#allocation4], %s181
        %s183 = sand.u32 %s107, 1
        %s184 = scalar_lea.vmem [#allocation3], %s183
        %p185 = scmp.lt.s32.totalorder %s21, 1
        %s186 = scalar_select %p185, %s21, 1
        %p187 = scmp.lt.s32.totalorder %s22, 0
        %s188 = scalar_select %p187, %s22, 0
        %s189 = smul.addr %s188, 3
        %s190 = smul.addr %s186, 3
        %s191 = sadd.s32 %s189, %s190
        %s192 = smul.addr %s191, 4
        %s193 = scalar_lea.vmem %s0, %s192
        %p195 = scmp.eq.s32.totalorder %s22, 0
        // Predicated region
        $region33: #{tpu_custom_call.1} parent=31 // pred_check
          %p196 = pneg %p195
        $region34: #{tpu_custom_call.1} parent=31 // pred_check_branch
          %198 = sbr.rel (%p196) target = $region36
        $region35: #{tpu_custom_call.1} parent=31 // pred_region
          %vm199 = vcmask 261120
          %200 = vst.msk [vmem:[#allocation2] sm:$0xff] %vm199, -3.4028235e+38
        $region36: #{tpu_custom_call.1} parent=31 // pred_fallthru
          _
        %v201 = vld [vmem:[%s193] sm:$0xf]
        %v202 = vld [vmem:[%s193 + $0x4] sm:$0xf]
        %v203 = vld [vmem:[%s193 + $0x8] sm:$0x1]
        %v206 = vunpack.c.l.b16 %v201
        %v207 = vunpack.c.l.b16 %v202
        %v208 = vpack.c.b16 %v207, %v206
        %v210 = vunpack.c.l.b16 %v203
        %v211 = vpack.c.b16 %v210, %v210
        %vm212 = vsmask.f32 7424
        %v214 = vshrl.u32 %v208, 16
        %v216 = vshll.u32 %v208, 16
        %v218 = vrot.slane %v216, 1
        %v219 = vor.u32 %v214, %v218
        %v221 = vshll.u32 %v211, 16
        %v223 = vrot.slane %v221, 1
        %v224 = vsel %vm212, %v219, %v223
        %225 = vrot.lane.b32.xlu0 %v224, 32
        %v226 = vpop.permute.xlu0 %225
        %vm227 = vcmask 1046528
        %v228 = vrot.slane %v208, 1
        %v229 = vrot.slane %v211, 1
        %v230 = vsel %vm227, %v228, %v229
        %231 = vrot.lane.b32.xlu0 %v230, 64
        %v232 = vpop.permute.xlu0 %231
        %vm233 = vcmask 261120
        %v235 = vsel %vm233, %v208, %v226
        %vm236 = vcmask 523264
        %v238 = vsel %vm236, %v235, %v232
        %v239 = vld [vmem:[%s1] sm:$0xf]
        %v240 = vld [vmem:[%s1 + $0x4] sm:$0xf]
        %v241 = vld [vmem:[%s1 + $0x8] sm:$0xf]
        %v242 = vld [vmem:[%s1 + $0xc] sm:$0xf]
        %v243 = vld [vmem:[%s1 + $0x10] sm:$0xf]
        %v244 = vld [vmem:[%s1 + $0x14] sm:$0xf]
        %v245 = vld [vmem:[%s1 + $0x18] sm:$0xf]
        %v246 = vld [vmem:[%s1 + $0x1c] sm:$0xf]
        %v247 = vld [vmem:[%s1 + $0x20] sm:$0xf]
        %v248 = vld [vmem:[%s1 + $0x24] sm:$0xf]
        %v249 = vld [vmem:[%s1 + $0x28] sm:$0xf]
        %v250 = vld [vmem:[%s1 + $0x2c] sm:$0xf]
        %v263 = vunpack.c.l.b16 %v239
        %v264 = vunpack.c.l.b16 %v240
        %v265 = vunpack.c.l.b16 %v241
        %v266 = vunpack.c.l.b16 %v242
        %v267 = vunpack.c.l.b16 %v243
        %v268 = vunpack.c.l.b16 %v244
        %v269 = vunpack.c.l.b16 %v245
        %v270 = vunpack.c.l.b16 %v246
        %v271 = vunpack.c.l.b16 %v247
        %v272 = vunpack.c.l.b16 %v248
        %v273 = vunpack.c.l.b16 %v249
        %v274 = vunpack.c.l.b16 %v250
        %v275 = vpack.c.b16 %v264, %v263
        %v276 = vpack.c.b16 %v266, %v265
        %v277 = vpack.c.b16 %v268, %v267
        %v278 = vpack.c.b16 %v270, %v269
        %v279 = vpack.c.b16 %v272, %v271
        %v280 = vpack.c.b16 %v274, %v273
        %vm287 = vcmask 785408
        %v288 = vsel %vm287, %v238, 0
        %290 = vmatprep.subr.bf16.mxu0 0
        %291 = vmatpush1.bf16.msra.mxu0 %v275
        %292 = vmatprep.subr.bf16.mxu0 0
        %293 = vmatpush1.bf16.msra.mxu0 %v276
        %294 = vmatprep.subr.bf16.mxu0 0
        %295 = vmatpush1.bf16.msra.mxu0 %v277
        %296 = vmatprep.subr.bf16.mxu0 0
        %297 = vmatpush1.bf16.msra.mxu0 %v278
        %298 = vmatprep.subr.bf16.mxu0 0
        %299 = vmatpush1.bf16.msra.mxu0 %v279
        %300 = vmatprep.subr.bf16.mxu0 0
        %301 = vmatpush1.bf16.msra.mxu0 %v280
        %302 = vmatprep.subr.bf16.mxu0 0
        %303 = vmatpush1.bf16.msra.mxu0 0
        %304 = vmatprep.subr.bf16.mxu0 0
        %305 = vmatpush1.bf16.msra.mxu0 0
        %306 = vmatprep.subr.bf16.mxu0 0
        %307 = vmatpush1.bf16.msra.mxu0 0
        %308 = vmatprep.subr.bf16.mxu0 0
        %309 = vmatpush1.bf16.msra.mxu0 0
        %310 = vmatprep.subr.bf16.mxu0 0
        %311 = vmatpush1.bf16.msra.mxu0 0
        %312 = vmatprep.subr.bf16.mxu0 0
        %313 = vmatpush1.bf16.msra.mxu0 0
        %314 = vmatprep.subr.bf16.mxu0 0
        %315 = vmatpush1.bf16.msra.mxu0 0
        %316 = vmatprep.subr.bf16.mxu0 0
        %317 = vmatpush1.bf16.msra.mxu0 0
        %318 = vmatprep.subr.bf16.mxu0 0
        %319 = vmatpush1.bf16.msra.mxu0 0
        %320 = vmatprep.subr.bf16.mxu0 0
        %321 = vmatpush1.bf16.msra.mxu0 0
        %322 = vmatprep.mubr.bf16.mxu0 0
        %323 = vmatmul.mubr.bf16.gmra.mrb[0].mxu0 %v288
        %v324 = vpop.f32.mrb[0].mxu0
        %v325 = vadd.f32 0.0, %v324
        %v326 = vpop.f32.mrb[0].mxu0
        %v327 = vpop.f32.mrb[0].mxu0
        %v328 = vadd.f32 0.0, %v327
        %v329 = vpop.f32.mrb[0].mxu0
        %330 = vdwg.mxu0
        %v331 = vsel %vm233, %v325, -inf
        %v332 = vsel %vm233, %v328, -inf
        %v333 = vmax.f32 %v331, %v332
        %v334 = vld [vmem:[#allocation2] sm:$0xff]
        %v335 = vmax.f32 %v334, %v333
        %336 = vst.msk [vmem:[#allocation2] sm:$0xff] %vm233, %v335
        // Predicated region
        $region37: #{tpu_custom_call.1} parent=31 // pred_check
          %p337 = pneg %p195
        $region38: #{tpu_custom_call.1} parent=31 // pred_check_branch
          %339 = sbr.rel (%p337) target = $region40
        $region39: #{tpu_custom_call.1} parent=31 // pred_region
          %v340 = vld [vmem:[#allocation2] sm:$0xff]
          %v341 = vsel %vm233, %v340, -inf
          %v342 = vrot.slane %v341, 4
          %v343 = vmax.f32 %v341, %v342
          %v344 = vrot.slane %v343, 2
          %v345 = vmax.f32 %v343, %v344
          %v346 = vrot.slane %v345, 1
          %v347 = vmax.f32 %v345, %v346
          %v348 = vld [vmem:[%s2] sm:$0x1]
          %v349 = vadd.f32 %v347, %v348
          %v350 = vmax.f32 %v349, 0.0
          %vm351 = vcmask 253952
          %352 = vst.msk [vmem:[%s184] sm:$0x1] %vm351, %v350
        $region40: #{tpu_custom_call.1} parent=31 // pred_fallthru
          _
        %s353 = sand.u32 %s107, 1
        %s354 = scalar_lea.sflag [#allocation4], %s353
        %s355 = sand.u32 %s107, 1
        %s356 = scalar_lea.vmem [#allocation3], %s355
        // Predicated region
        $region41: #{tpu_custom_call.1} parent=31 // pred_check
          %p357 = pneg %p117
        $region42: #{tpu_custom_call.1} parent=31 // pred_check_branch
          %359 = sbr.rel (%p357) target = $region44
        $region43: #{tpu_custom_call.1} parent=31 // pred_region
          %s361 = ssub.s32 16, 16
          %362 = vsyncadd %s354, %s361
          %s363 = smul.addr %s21, 16
          %s364 = scalar_lea.hbm %s3, %s363
          %s366 = sshll.u32 %s356, 4
          %s367 = int_to_ptr.vmem [resolvable:$true] %s366
          %369 = dma.vmem_to_hbm [thread:$0]  %s367, 16, %s364, %s354
        $region44: #{tpu_custom_call.1} parent=31 // pred_fallthru
          _
      $region32: #{tpu_custom_call.1} parent=5 // pred_fallthru
        _
      %p370 = scmp.le.s32.totalorder 2, %s12
      // Predicated region
      $region45: #{tpu_custom_call.1} parent=5 // pred_check
        %p371 = pneg %p370
      $region46: #{tpu_custom_call.1} parent=5 // pred_check_branch
        %373 = sbr.rel (%p371) target = $region48
      $region47: #{tpu_custom_call.1} parent=5 // pred_region
        %s374 = ssub.s32 %s12, 2
        // Predicated region
        $region49: #{tpu_custom_call.1} parent=47 // pred_check
          %p375 = pneg %p123
        $region50: #{tpu_custom_call.1} parent=47 // pred_check_branch
          %377 = sbr.rel (%p375) target = $region52
        $region51: #{tpu_custom_call.1} parent=47 // pred_region
          %s378 = sand.u32 %s108, 1
          %s379 = scalar_lea.sflag [#allocation4], %s378
          %s380 = sand.u32 %s108, 1
          %s381 = scalar_lea.vmem [#allocation3], %s380
          %382 = dma.done %s379, 16
        $region52: #{tpu_custom_call.1} parent=47 // pred_fallthru
          _
      $region48: #{tpu_custom_call.1} parent=5 // pred_fallthru
        _
    $region6: #{tpu_custom_call.1} parent=1 // loop_footer
      %s16 = sadd.s32 1, %s12
    $region7: #{tpu_custom_call.1} parent=1 // loop_footer_branch
      %11 = sbr.rel target = $region3
    $region8: #{tpu_custom_call.1} parent=1 // loop_exit
      _
    %383 = vsyncpa [#allocation4], 1
    %s384 = scalar_lea.sflag [#allocation4], 1
    %385 = vsyncpa %s384, 1

</llo_original>
